<compile_context>
chip_gen: v7x
topology: tpu7x:2x2x1
jax: 0.10.0
libtpu: 0.0.40
codegen_flags: <defaults>
</compile_context>

<pallas_src>
import math

import jax
import jax.numpy as jnp
from jax.experimental import pallas as pl
from jax.experimental.pallas import tpu as pltpu


LANES = 128          # vreg lane width
ROW_TILE = 512       # f32: 512*128*4 B = 256 KiB per tile (sweet spot per roofline sweep)


def _copy_kernel(x_ref, o_ref):
    # Straight VMEM load -> VMEM store of the current block.
    o_ref[...] = x_ref[...]


def rnn_forward(x):
    """Pallas implementation of RNN.forward(x) == x (identity copy)."""
    orig_shape = x.shape
    total = int(math.prod(orig_shape))
    if total == 0:
        return x

    # Always present a lane-dense (rows, 128) slab to the kernel.
    flat = x.reshape(-1)
    pad_to_lanes = (-total) % LANES
    if pad_to_lanes:
        flat = jnp.pad(flat, (0, pad_to_lanes))
    rows = flat.shape[0] // LANES

    if rows <= ROW_TILE:
        # Small case (the 8 KiB example lands here: 2048 elems -> (16, 128)):
        # single full-array block, one HBM->VMEM->HBM DMA pair, no grid.
        x2d = flat.reshape(rows, LANES)
        out2d = pl.pallas_call(
            _copy_kernel,
            out_shape=jax.ShapeDtypeStruct((rows, LANES), x.dtype),
            in_specs=[pl.BlockSpec((rows, LANES), lambda: (0, 0))],
            out_specs=pl.BlockSpec((rows, LANES), lambda: (0, 0)),
        )(x2d)
        out_flat = out2d.reshape(-1)
    else:
        # Large case: 1-D grid over row tiles; double-buffered DMA pipeline.
        pad_rows = (-rows) % ROW_TILE
        if pad_rows:
            flat = jnp.pad(flat, (0, pad_rows * LANES))
        rows_padded = rows + pad_rows
        x2d = flat.reshape(rows_padded, LANES)
        grid = (rows_padded // ROW_TILE,)
        out2d = pl.pallas_call(
            _copy_kernel,
            out_shape=jax.ShapeDtypeStruct((rows_padded, LANES), x.dtype),
            grid=grid,
            in_specs=[pl.BlockSpec((ROW_TILE, LANES), lambda i: (i, 0))],
            out_specs=pl.BlockSpec((ROW_TILE, LANES), lambda i: (i, 0)),
            compiler_params=pltpu.CompilerParams(
                dimension_semantics=("parallel",)),
        )(x2d)
        out_flat = out2d.reshape(-1)

    if out_flat.shape[0] != total:
        out_flat = out_flat[:total]
    return out_flat.reshape(orig_shape)


if __name__ == "__main__":
    key = jax.random.PRNGKey(0)
    # Small conv-style input, consistent with the module's generic forward(x).
    x = jax.random.normal(key, (2, 4, 16, 16), dtype=jnp.float32)

    y = rnn_forward(x)
    jax.block_until_ready(y)

    assert y.shape == x.shape, (y.shape, x.shape)
    assert y.dtype == x.dtype, (y.dtype, x.dtype)
    assert bool(jnp.all(y == x)), "identity mismatch"

    print("KERNEL_OK")
</pallas_src>

<mosaic_0001>
module attributes {stable_mosaic.version = 11 : i64} {
  func.func @_copy_kernel(%arg0: memref<16x128xf32, #tpu.memory_space<vmem>>, %arg1: memref<16x128xf32, #tpu.memory_space<vmem>>) attributes {dimension_semantics = [], scalar_prefetch = 0 : i64, scratch_operands = 0 : i64, tpu.core_type = #tpu.core_type<tc>} {
    %c0 = arith.constant 0 : index
    %c0_0 = arith.constant 0 : index
    %0 = vector.load %arg0[%c0, %c0_0] : memref<16x128xf32, #tpu.memory_space<vmem>>, vector<16x128xf32>
    %c0_1 = arith.constant 0 : index
    %c0_2 = arith.constant 0 : index
    %1 = vector.load %arg1[%c0_1, %c0_2] : memref<16x128xf32, #tpu.memory_space<vmem>>, vector<16x128xf32>
    tpu.vector_store %arg1[%c0_1, %c0_2], %0 {strides = array<i32>} : memref<16x128xf32, #tpu.memory_space<vmem>>, vector<16x128xf32>,
    return
  }
}

</mosaic_0001>

<llo_original>
// kernel: tpu_custom_call.1
$region0: #{tpu_custom_call.1}
  #allocation0 [shape = 'u32[]', space=smem, size = 0x4, offset = 0x4, fixed_abs, tag = 'smem constant byte address 0x4 - core index']
  #allocation1 [shape = 'u32[144,128]{1,0:T(1,128)}', space=vmem, size = 0x12000, scoped, tag = 'internal scratch']
  %s0 = inlined_call_operand.hbm [shape: f32[16,128], index: 0, kind: input, shape index: {}]
  %s1 = inlined_call_operand.hbm [shape: f32[16,128], index: 1, kind: output, shape index: {}]
  %s2 = sld [smem:[#allocation0]]
  $region18: #{tpu_custom_call.1} parent=0
    _
  %s4 = ssub.s32 1, %s2
  %s5 = scalar_select 0, %s4, %s2
  $region1: #{tpu_custom_call.1} parent=0
    #allocation2 [shape = 'u8[8192]{0}', space=vmem, size = 0x2000, scoped, tag = 'input window, operand 0, single buffered']
    #allocation3 [shape = 's32[1]{0}', space=sflag, size = 0x4, scoped, tag = 'scoped memory for tpu_custom_call.1']
    #allocation4 [shape = 's32[1]{0}', space=sflag, size = 0x4, scoped, tag = 'scoped memory for tpu_custom_call.1']
    #allocation5 [shape = 'u8[8192]{0}', space=vmem, size = 0x2000, scoped, tag = 'output window, operand 0, single buffered']
    %6 = vsyncpa [#allocation3], 0
    %7 = vsyncpa [#allocation4], 0
    // Predicated region
    $region2: #{tpu_custom_call.1} parent=1 // pred_check
      _
    $region3: #{tpu_custom_call.1} parent=1 // pred_check_branch
      %9 = sbr.rel (0) target = $region5
    $region4: #{tpu_custom_call.1} parent=1 // pred_region
      %s11 = ssub.s32 256, 256
      %12 = vsyncadd [#allocation3], %s11
      %s13 = sshll.u32 [#allocation2], 4
      %s14 = int_to_ptr.vmem [resolvable:$true] %s13
      %19 = dma.hbm_to_vmem [thread:$0]  %s0, 256, %s14, [#allocation3], 128, 128, 8
    $region5: #{tpu_custom_call.1} parent=1 // pred_fallthru
      _
    // Predicated region
    $region6: #{tpu_custom_call.1} parent=1 // pred_check
      _
    $region7: #{tpu_custom_call.1} parent=1 // pred_check_branch
      %21 = sbr.rel (0) target = $region9
    $region8: #{tpu_custom_call.1} parent=1 // pred_region
      %22 = dma.done [#allocation3], 256
    $region9: #{tpu_custom_call.1} parent=1 // pred_fallthru
      _
    %v23 = vld [vmem:[#allocation2] sm:$0xff]
    %v24 = vld [vmem:[#allocation2 + $0x8] sm:$0xff]
    %25 = vst [vmem:[#allocation5] sm:$0xff] %v23
    %26 = vst [vmem:[#allocation5 + $0x8] sm:$0xff] %v24
    // Predicated region
    $region10: #{tpu_custom_call.1} parent=1 // pred_check
      _
    $region11: #{tpu_custom_call.1} parent=1 // pred_check_branch
      %28 = sbr.rel (0) target = $region13
    $region12: #{tpu_custom_call.1} parent=1 // pred_region
      %s30 = ssub.s32 256, 256
      %31 = vsyncadd [#allocation4], %s30
      %s32 = sshll.u32 [#allocation5], 4
      %s33 = int_to_ptr.vmem [resolvable:$true] %s32
      %38 = dma.vmem_to_hbm [thread:$0]  %s33, 256, %s1, [#allocation4], 128, 128, 8
    $region13: #{tpu_custom_call.1} parent=1 // pred_fallthru
      _
    // Predicated region
    $region14: #{tpu_custom_call.1} parent=1 // pred_check
      _
    $region15: #{tpu_custom_call.1} parent=1 // pred_check_branch
      %40 = sbr.rel (0) target = $region17
    $region16: #{tpu_custom_call.1} parent=1 // pred_region
      %41 = dma.done [#allocation4], 256
    $region17: #{tpu_custom_call.1} parent=1 // pred_fallthru
      _
    %42 = vsyncpa [#allocation3], 1
    %43 = vsyncpa [#allocation4], 1

</llo_original>
